<compile_context>
chip_gen: v5e
topology: v5e:2x2
jax: 0.10.0
libtpu: 0.0.40
codegen_flags: <defaults>
</compile_context>

<pallas_src>
import jax
import jax.numpy as jnp
from jax.experimental import pallas as pl
from jax.experimental.pallas import tpu as pltpu


def _lrelu(v):
    return jnp.where(v > 0, v, 0.1 * v)


def _vd_kernel(zp_ref, cp_ref,
               w0z_ref, w0c_ref, b0_ref,
               w1_ref, b1_ref,
               w2_ref, b2_ref,
               w3_ref, b3_ref,
               out_ref):
    """Packed 4-layer MLP on one batch tile (all operands already in VMEM)."""
    # fc0: z-part and c-part accumulate into the same f32 result -> no concat.
    h = jnp.dot(zp_ref[...], w0z_ref[...], preferred_element_type=jnp.float32)
    h = h + jnp.dot(cp_ref[...], w0c_ref[...], preferred_element_type=jnp.float32)
    h = _lrelu(h + b0_ref[...])

    h = _lrelu(jnp.dot(h.astype(w1_ref.dtype), w1_ref[...],
                       preferred_element_type=jnp.float32) + b1_ref[...])
    h = _lrelu(jnp.dot(h.astype(w2_ref.dtype), w2_ref[...],
                       preferred_element_type=jnp.float32) + b2_ref[...])
    h = jnp.dot(h.astype(w3_ref.dtype), w3_ref[...],
                preferred_element_type=jnp.float32) + b3_ref[...]

    out_ref[...] = h.astype(out_ref.dtype)


def _blockdiag(w, k):
    """k x k block-diagonal replication so one packed row holds k samples."""
    din, dout = w.shape
    out = jnp.zeros((k * din, k * dout), dtype=w.dtype)
    for i in range(k):
        out = out.at[i * din:(i + 1) * din, i * dout:(i + 1) * dout].set(w)
    return out


def _pick_tile(m, tile_rows):
    """Packed-row tile: full array if it fits, else prefer a divisor of m
    (multiple of 8, within [tile_rows/2, tile_rows]) so no HBM padding pass
    is needed; fall back to tile_rows (+pad) otherwise."""
    if m <= tile_rows:
        return m
    lo = max(tile_rows // 2, 8)
    for t in range(tile_rows, lo - 1, -8):
        if m % t == 0:
            return t
    return tile_rows


def visual_decoder(z, c, params, *, pack=4, tile_rows=2048,
                   compute_dtype=jnp.bfloat16, out_dtype=None):
    """Forward pass of Visual_Decoder.

    z: (N, latent_size), c: (N, semantic_dim).
    params: [(w0,b0),(w1,b1),(w2,b2),(w3,b3)], weights stored as (in, out)
    (transpose of PyTorch's (out, in)).

    pack: samples packed side-by-side per lane row (4 -> 128-lane dense z/c
    loads and 256-wide packed hidden dims for the v6e/v7x MXU).
    tile_rows: packed rows per grid step (multiple of 8).  Default 2048
    (= 8192 samples) keeps per-step overhead <10% while staying well under
    the scoped-VMEM defaults; on v7x keep it small enough that the grid has
    >= 2 steps so both TensorCores get work.
    compute_dtype: matmul/I-O dtype (bf16 default; f32 accumulation always).
    out_dtype: output dtype (defaults to z's original dtype).
    """
    assert tile_rows % 8 == 0 and tile_rows > 0
    n, d_z = z.shape
    d_c = c.shape[1]
    (w0, b0), (w1, b1), (w2, b2), (w3, b3) = params
    d_out = w3.shape[1]

    orig_dtype = z.dtype
    out_dtype = orig_dtype if out_dtype is None else jnp.dtype(out_dtype)
    cdt = orig_dtype if compute_dtype is None else jnp.dtype(compute_dtype)

    z = z.astype(cdt)
    c = c.astype(cdt)
    w0, w1, w2, w3 = (w.astype(cdt) for w in (w0, w1, w2, w3))
    # biases stay f32 (added to the f32 accumulator)
    b0, b1, b2, b3 = (b.astype(jnp.float32) for b in (b0, b1, b2, b3))

    # fc0 split: first d_z input rows act on z, the rest on c (== concat order).
    w0_z, w0_c = w0[:d_z], w0[d_z:]

    # ---- block-diagonal packed weights (built once, tiny) --------------------
    w0z_p = _blockdiag(w0_z, pack)                       # (pack*d_z,  pack*d_h0)
    w0c_p = _blockdiag(w0_c, pack)                       # (pack*d_c,  pack*d_h0)
    w1_p = _blockdiag(w1, pack)
    w2_p = _blockdiag(w2, pack)
    w3_p = _blockdiag(w3, pack)                          # (pack*d_h2, pack*d_out)
    b0_p = jnp.tile(b0, pack).reshape(1, -1)
    b1_p = jnp.tile(b1, pack).reshape(1, -1)
    b2_p = jnp.tile(b2, pack).reshape(1, -1)
    b3_p = jnp.tile(b3, pack).reshape(1, -1)

    # ---- batch packing / tiling (single pad covers pack + tile alignment) ----
    m = pl.cdiv(n, pack)                                 # packed rows for data
    tile_m = _pick_tile(m, tile_rows)
    m_pad = pl.cdiv(m, tile_m) * tile_m
    n_pad = pack * m_pad
    if n_pad != n:
        # TODO(synk): keep N a multiple of pack*tile_m upstream to skip this copy.
        z = jnp.pad(z, ((0, n_pad - n), (0, 0)))
        c = jnp.pad(c, ((0, n_pad - n), (0, 0)))
    z_p = z.reshape(m_pad, pack * d_z)                   # free row-major reshape
    c_p = c.reshape(m_pad, pack * d_c)

    grid = (m_pad // tile_m,)

    def _batch_spec(cols):
        return pl.BlockSpec((tile_m, cols), lambda i: (i, 0))

    def _resident(arr):
        # grid-invariant operand: one block == whole array, stays in VMEM
        return pl.BlockSpec(arr.shape, lambda i: (0, 0))

    weights = (w0z_p, w0c_p, b0_p, w1_p, b1_p, w2_p, b2_p, w3_p, b3_p)
    weight_bytes = sum(int(a.size) * a.dtype.itemsize for a in weights)
    io_bytes = (int(z_p.size) * z_p.dtype.itemsize
                + int(c_p.size) * c_p.dtype.itemsize
                + int(m_pad * pack * d_out) * out_dtype.itemsize)
    flops = 2 * m_pad * sum(int(w.shape[0]) * int(w.shape[1])
                            for w in (w0z_p, w0c_p, w1_p, w2_p, w3_p))

    # VMEM footprint (double-buffered I/O tiles + resident weights).
    tile_io_bytes = (tile_m * (z_p.shape[1] + c_p.shape[1]) * z_p.dtype.itemsize
                     + tile_m * pack * d_out * out_dtype.itemsize)
    vmem_est = 2 * tile_io_bytes + 2 * weight_bytes + (2 << 20)
    cp_kwargs = dict(dimension_semantics=("parallel",))
    if vmem_est > (12 << 20):   # above/near the v5e 16 MiB scoped default
        cp_kwargs["vmem_limit_bytes"] = int(min(vmem_est + (4 << 20), 96 << 20))

    out = pl.pallas_call(
        _vd_kernel,
        out_shape=jax.ShapeDtypeStruct((m_pad, pack * d_out), out_dtype),
        grid_spec=pltpu.PrefetchScalarGridSpec(
            num_scalar_prefetch=0,
            grid=grid,
            in_specs=[
                _batch_spec(pack * d_z),
                _batch_spec(pack * d_c),
                _resident(w0z_p), _resident(w0c_p), _resident(b0_p),
                _resident(w1_p), _resident(b1_p),
                _resident(w2_p), _resident(b2_p),
                _resident(w3_p), _resident(b3_p),
            ],
            out_specs=pl.BlockSpec((tile_m, pack * d_out), lambda i: (i, 0)),
        ),
        compiler_params=pltpu.CompilerParams(**cp_kwargs),
        cost_estimate=pl.CostEstimate(
            flops=int(flops), transcendentals=0,
            bytes_accessed=int(weight_bytes + io_bytes)),
    )(z_p, c_p, *weights)

    # (m_pad, pack*d_out) -> (n_pad, d_out) is a free row-major reshape.
    return out.reshape(n_pad, d_out)[:n]


def init_params(key, input_size, latent_size, feat_dim):
    """weights_init: Linear weights ~ N(0, 0.02), biases = 0.
    Weights stored as (in, out) == transpose of PyTorch's (out, in)."""
    dims = [
        (input_size, latent_size * 2),          # fc0
        (latent_size * 2, feat_dim // 2),       # fc1
        (feat_dim // 2, feat_dim),              # fc2
        (feat_dim, feat_dim),                   # fc3
    ]
    params = []
    for (din, dout) in dims:
        key, kw = jax.random.split(key)
        w = 0.02 * jax.random.normal(kw, (din, dout), dtype=jnp.float32)
        b = jnp.zeros((dout,), dtype=jnp.float32)
        params.append((w, b))
    return params


def reference_forward(z, c, params):
    """Pure-JAX reference for correctness check (high-precision dots)."""
    x = jnp.concatenate([z, c], axis=-1)
    (w0, b0), (w1, b1), (w2, b2), (w3, b3) = params
    hp = jax.lax.Precision.HIGHEST
    x = _lrelu(jnp.dot(x, w0, precision=hp) + b0)
    x = _lrelu(jnp.dot(x, w1, precision=hp) + b1)
    x = _lrelu(jnp.dot(x, w2, precision=hp) + b2)
    x = jnp.dot(x, w3, precision=hp) + b3
    return x


if __name__ == "__main__":
    # Small config consistent with the module:
    #   APFG_latent_size = 32, semantic_dim = 32, LAST_FEATS_DIM (feat_dim) = 64
    latent_size = 32
    semantic_dim = 32
    feat_dim = 64
    input_size = latent_size + semantic_dim

    key = jax.random.PRNGKey(0)
    kz, kc, kp, kz2, kc2 = jax.random.split(key, 5)
    params = init_params(kp, input_size, latent_size, feat_dim)

    # --- check 1: batch not a multiple of pack, single grid step -------------
    batch = 10
    z = jax.random.normal(kz, (batch, latent_size), dtype=jnp.float32)
    c = jax.random.normal(kc, (batch, semantic_dim), dtype=jnp.float32)
    ref = reference_forward(z, c, params)

    out_f32 = jax.block_until_ready(
        visual_decoder(z, c, params, compute_dtype=jnp.float32))
    assert out_f32.shape == (batch, feat_dim)
    assert jnp.allclose(out_f32, ref, atol=1e-4, rtol=1e-4), "f32 mismatch"

    # default bf16 I/O + MXU path (f32 accumulation), f32 output, looser check
    out_bf = jax.block_until_ready(visual_decoder(z, c, params))
    assert out_bf.shape == (batch, feat_dim)
    assert jnp.allclose(out_bf, ref, atol=2e-5, rtol=5e-2), "bf16 mismatch"

    # --- check 2: multi-step grid with ragged final tile ----------------------
    batch2 = 50
    z2 = jax.random.normal(kz2, (batch2, latent_size), dtype=jnp.float32)
    c2 = jax.random.normal(kc2, (batch2, semantic_dim), dtype=jnp.float32)
    ref2 = reference_forward(z2, c2, params)
    out2 = jax.block_until_ready(
        visual_decoder(z2, c2, params, tile_rows=8, compute_dtype=jnp.float32))
    assert out2.shape == (batch2, feat_dim)
    assert jnp.allclose(out2, ref2, atol=1e-4, rtol=1e-4), "tiled mismatch"

    print("KERNEL_OK")
</pallas_src>

<mosaic_0001>
module attributes {stable_mosaic.version = 11 : i64} {
  func.func @_vd_kernel(%arg0: i32, %arg1: memref<3x128xf32, #tpu.memory_space<vmem>>, %arg2: memref<3x128xf32, #tpu.memory_space<vmem>>, %arg3: memref<128x256xf32, #tpu.memory_space<vmem>>, %arg4: memref<128x256xf32, #tpu.memory_space<vmem>>, %arg5: memref<1x256xf32, #tpu.memory_space<vmem>>, %arg6: memref<256x128xf32, #tpu.memory_space<vmem>>, %arg7: memref<1x128xf32, #tpu.memory_space<vmem>>, %arg8: memref<128x256xf32, #tpu.memory_space<vmem>>, %arg9: memref<1x256xf32, #tpu.memory_space<vmem>>, %arg10: memref<256x256xf32, #tpu.memory_space<vmem>>, %arg11: memref<1x256xf32, #tpu.memory_space<vmem>>, %arg12: memref<3x256xf32, #tpu.memory_space<vmem>>) attributes {dimension_semantics = [#tpu.dimension_semantics<parallel>], iteration_bounds = array<i64: 1>, scalar_prefetch = 0 : i64, scratch_operands = 0 : i64, tpu.core_type = #tpu.core_type<tc>, window_params = [{transform_indices = @transform_0, window_bounds = array<i64: 3, 128>}, {transform_indices = @transform_1, window_bounds = array<i64: 3, 128>}, {pipeline_mode = #tpu.pipeline_mode<synchronous>, transform_indices = @transform_2, window_bounds = array<i64: 128, 256>}, {pipeline_mode = #tpu.pipeline_mode<synchronous>, transform_indices = @transform_3, window_bounds = array<i64: 128, 256>}, {pipeline_mode = #tpu.pipeline_mode<synchronous>, transform_indices = @transform_4, window_bounds = array<i64: 1, 256>}, {pipeline_mode = #tpu.pipeline_mode<synchronous>, transform_indices = @transform_5, window_bounds = array<i64: 256, 128>}, {pipeline_mode = #tpu.pipeline_mode<synchronous>, transform_indices = @transform_6, window_bounds = array<i64: 1, 128>}, {pipeline_mode = #tpu.pipeline_mode<synchronous>, transform_indices = @transform_7, window_bounds = array<i64: 128, 256>}, {pipeline_mode = #tpu.pipeline_mode<synchronous>, transform_indices = @transform_8, window_bounds = array<i64: 1, 256>}, {pipeline_mode = #tpu.pipeline_mode<synchronous>, transform_indices = @transform_9, window_bounds = array<i64: 256, 256>}, {pipeline_mode = #tpu.pipeline_mode<synchronous>, transform_indices = @transform_10, window_bounds = array<i64: 1, 256>}, {transform_indices = @transform_11, window_bounds = array<i64: 3, 256>}]} {
    %c0 = arith.constant 0 : index
    %c0_0 = arith.constant 0 : index
    %0 = vector.load %arg1[%c0, %c0_0] : memref<3x128xf32, #tpu.memory_space<vmem>>, vector<3x128xf32>
    %c0_1 = arith.constant 0 : index
    %c0_2 = arith.constant 0 : index
    %1 = vector.load %arg3[%c0_1, %c0_2] : memref<128x256xf32, #tpu.memory_space<vmem>>, vector<128x256xf32>
    %cst = arith.constant dense<0.000000e+00> : vector<3x256xf32>
    %2 = tpu.matmul %0, %1, %cst {dimension_numbers = #tpu.dot_dimension_numbers<[1], [0], [0], [1], [0, 0, 1, 1], [], []>} : vector<3x128xf32>, vector<128x256xf32>, vector<3x256xf32> -> vector<3x256xf32>
    %c0_3 = arith.constant 0 : index
    %c0_4 = arith.constant 0 : index
    %3 = vector.load %arg2[%c0_3, %c0_4] : memref<3x128xf32, #tpu.memory_space<vmem>>, vector<3x128xf32>
    %c0_5 = arith.constant 0 : index
    %c0_6 = arith.constant 0 : index
    %4 = vector.load %arg4[%c0_5, %c0_6] : memref<128x256xf32, #tpu.memory_space<vmem>>, vector<128x256xf32>
    %cst_7 = arith.constant dense<0.000000e+00> : vector<3x256xf32>
    %5 = tpu.matmul %3, %4, %cst_7 {dimension_numbers = #tpu.dot_dimension_numbers<[1], [0], [0], [1], [0, 0, 1, 1], [], []>} : vector<3x128xf32>, vector<128x256xf32>, vector<3x256xf32> -> vector<3x256xf32>
    %6 = arith.addf %2, %5 : vector<3x256xf32>
    %c0_8 = arith.constant 0 : index
    %c0_9 = arith.constant 0 : index
    %7 = vector.load %arg5[%c0_8, %c0_9] : memref<1x256xf32, #tpu.memory_space<vmem>>, vector<1x256xf32>
    %8 = vector.broadcast %7 : vector<1x256xf32> to vector<3x256xf32>
    %9 = arith.addf %6, %8 : vector<3x256xf32>
    %cst_10 = arith.constant 0.000000e+00 : f32
    %10 = vector.broadcast %cst_10 : f32 to vector<3x256xf32>
    %11 = arith.cmpf ogt, %9, %10 : vector<3x256xf32>
    %cst_11 = arith.constant 1.000000e-01 : f32
    %12 = vector.broadcast %cst_11 : f32 to vector<3x256xf32>
    %13 = arith.mulf %12, %9 : vector<3x256xf32>
    %14 = arith.select %11, %9, %13 : vector<3x256xi1>, vector<3x256xf32>
    %c0_12 = arith.constant 0 : index
    %c0_13 = arith.constant 0 : index
    %15 = vector.load %arg6[%c0_12, %c0_13] : memref<256x128xf32, #tpu.memory_space<vmem>>, vector<256x128xf32>
    %cst_14 = arith.constant dense<0.000000e+00> : vector<3x128xf32>
    %16 = tpu.matmul %14, %15, %cst_14 {dimension_numbers = #tpu.dot_dimension_numbers<[1], [0], [0], [1], [0, 0, 1, 1], [], []>} : vector<3x256xf32>, vector<256x128xf32>, vector<3x128xf32> -> vector<3x128xf32>
    %c0_15 = arith.constant 0 : index
    %c0_16 = arith.constant 0 : index
    %17 = vector.load %arg7[%c0_15, %c0_16] : memref<1x128xf32, #tpu.memory_space<vmem>>, vector<1x128xf32>
    %18 = vector.broadcast %17 : vector<1x128xf32> to vector<3x128xf32>
    %19 = arith.addf %16, %18 : vector<3x128xf32>
    %cst_17 = arith.constant 0.000000e+00 : f32
    %20 = vector.broadcast %cst_17 : f32 to vector<3x128xf32>
    %21 = arith.cmpf ogt, %19, %20 : vector<3x128xf32>
    %cst_18 = arith.constant 1.000000e-01 : f32
    %22 = vector.broadcast %cst_18 : f32 to vector<3x128xf32>
    %23 = arith.mulf %22, %19 : vector<3x128xf32>
    %24 = arith.select %21, %19, %23 : vector<3x128xi1>, vector<3x128xf32>
    %c0_19 = arith.constant 0 : index
    %c0_20 = arith.constant 0 : index
    %25 = vector.load %arg8[%c0_19, %c0_20] : memref<128x256xf32, #tpu.memory_space<vmem>>, vector<128x256xf32>
    %cst_21 = arith.constant dense<0.000000e+00> : vector<3x256xf32>
    %26 = tpu.matmul %24, %25, %cst_21 {dimension_numbers = #tpu.dot_dimension_numbers<[1], [0], [0], [1], [0, 0, 1, 1], [], []>} : vector<3x128xf32>, vector<128x256xf32>, vector<3x256xf32> -> vector<3x256xf32>
    %c0_22 = arith.constant 0 : index
    %c0_23 = arith.constant 0 : index
    %27 = vector.load %arg9[%c0_22, %c0_23] : memref<1x256xf32, #tpu.memory_space<vmem>>, vector<1x256xf32>
    %28 = vector.broadcast %27 : vector<1x256xf32> to vector<3x256xf32>
    %29 = arith.addf %26, %28 : vector<3x256xf32>
    %cst_24 = arith.constant 0.000000e+00 : f32
    %30 = vector.broadcast %cst_24 : f32 to vector<3x256xf32>
    %31 = arith.cmpf ogt, %29, %30 : vector<3x256xf32>
    %cst_25 = arith.constant 1.000000e-01 : f32
    %32 = vector.broadcast %cst_25 : f32 to vector<3x256xf32>
    %33 = arith.mulf %32, %29 : vector<3x256xf32>
    %34 = arith.select %31, %29, %33 : vector<3x256xi1>, vector<3x256xf32>
    %c0_26 = arith.constant 0 : index
    %c0_27 = arith.constant 0 : index
    %35 = vector.load %arg10[%c0_26, %c0_27] : memref<256x256xf32, #tpu.memory_space<vmem>>, vector<256x256xf32>
    %cst_28 = arith.constant dense<0.000000e+00> : vector<3x256xf32>
    %36 = tpu.matmul %34, %35, %cst_28 {dimension_numbers = #tpu.dot_dimension_numbers<[1], [0], [0], [1], [0, 0, 1, 1], [], []>} : vector<3x256xf32>, vector<256x256xf32>, vector<3x256xf32> -> vector<3x256xf32>
    %c0_29 = arith.constant 0 : index
    %c0_30 = arith.constant 0 : index
    %37 = vector.load %arg11[%c0_29, %c0_30] : memref<1x256xf32, #tpu.memory_space<vmem>>, vector<1x256xf32>
    %38 = vector.broadcast %37 : vector<1x256xf32> to vector<3x256xf32>
    %39 = arith.addf %36, %38 : vector<3x256xf32>
    %c0_31 = arith.constant 0 : index
    %c0_32 = arith.constant 0 : index
    %40 = vector.load %arg12[%c0_31, %c0_32] : memref<3x256xf32, #tpu.memory_space<vmem>>, vector<3x256xf32>
    tpu.vector_store %arg12[%c0_31, %c0_32], %39 {strides = array<i32>} : memref<3x256xf32, #tpu.memory_space<vmem>>, vector<3x256xf32>,
    return
  }
  func.func @transform_0(%arg0: i32) -> (i32, i32) {
    %c0_i32 = arith.constant 0 : i32
    %c0_i32_0 = arith.constant 0 : i32
    return %arg0, %c0_i32 : i32, i32
  }
  func.func @transform_1(%arg0: i32) -> (i32, i32) {
    %c0_i32 = arith.constant 0 : i32
    %c0_i32_0 = arith.constant 0 : i32
    return %arg0, %c0_i32 : i32, i32
  }
  func.func @transform_2(%arg0: i32) -> (i32, i32) {
    %c0_i32 = arith.constant 0 : i32
    %c0_i32_0 = arith.constant 0 : i32
    %c0_i32_1 = arith.constant 0 : i32
    return %c0_i32, %c0_i32_0 : i32, i32
  }
  func.func @transform_3(%arg0: i32) -> (i32, i32) {
    %c0_i32 = arith.constant 0 : i32
    %c0_i32_0 = arith.constant 0 : i32
    %c0_i32_1 = arith.constant 0 : i32
    return %c0_i32, %c0_i32_0 : i32, i32
  }
  func.func @transform_4(%arg0: i32) -> (i32, i32) {
    %c0_i32 = arith.constant 0 : i32
    %c0_i32_0 = arith.constant 0 : i32
    %c0_i32_1 = arith.constant 0 : i32
    return %c0_i32, %c0_i32_0 : i32, i32
  }
  func.func @transform_5(%arg0: i32) -> (i32, i32) {
    %c0_i32 = arith.constant 0 : i32
    %c0_i32_0 = arith.constant 0 : i32
    %c0_i32_1 = arith.constant 0 : i32
    return %c0_i32, %c0_i32_0 : i32, i32
  }
  func.func @transform_6(%arg0: i32) -> (i32, i32) {
    %c0_i32 = arith.constant 0 : i32
    %c0_i32_0 = arith.constant 0 : i32
    %c0_i32_1 = arith.constant 0 : i32
    return %c0_i32, %c0_i32_0 : i32, i32
  }
  func.func @transform_7(%arg0: i32) -> (i32, i32) {
    %c0_i32 = arith.constant 0 : i32
    %c0_i32_0 = arith.constant 0 : i32
    %c0_i32_1 = arith.constant 0 : i32
    return %c0_i32, %c0_i32_0 : i32, i32
  }
  func.func @transform_8(%arg0: i32) -> (i32, i32) {
    %c0_i32 = arith.constant 0 : i32
    %c0_i32_0 = arith.constant 0 : i32
    %c0_i32_1 = arith.constant 0 : i32
    return %c0_i32, %c0_i32_0 : i32, i32
  }
  func.func @transform_9(%arg0: i32) -> (i32, i32) {
    %c0_i32 = arith.constant 0 : i32
    %c0_i32_0 = arith.constant 0 : i32
    %c0_i32_1 = arith.constant 0 : i32
    return %c0_i32, %c0_i32_0 : i32, i32
  }
  func.func @transform_10(%arg0: i32) -> (i32, i32) {
    %c0_i32 = arith.constant 0 : i32
    %c0_i32_0 = arith.constant 0 : i32
    %c0_i32_1 = arith.constant 0 : i32
    return %c0_i32, %c0_i32_0 : i32, i32
  }
  func.func @transform_11(%arg0: i32) -> (i32, i32) {
    %c0_i32 = arith.constant 0 : i32
    %c0_i32_0 = arith.constant 0 : i32
    return %arg0, %c0_i32 : i32, i32
  }
}

</mosaic_0001>

<llo_original>
// kernel: tpu_custom_call.1
$region0: #{tpu_custom_call.1}
  #allocation0 [shape = 'u32[]', space=smem, size = 0x4, offset = 0x4, fixed_abs, tag = 'smem constant byte address 0x4 - core index']
  #allocation1 [shape = 'u32[72,128]{1,0:T(1,128)}', space=vmem, size = 0x9000, scoped, tag = 'internal scratch']
  %s0 = inlined_call_operand.hbm [shape: f32[3,128], index: 0, kind: input, shape index: {}]
  %s1 = inlined_call_operand.hbm [shape: f32[3,128], index: 1, kind: input, shape index: {}]
  %s2 = inlined_call_operand.hbm [shape: f32[128,256], index: 2, kind: input, shape index: {}]
  %s3 = inlined_call_operand.hbm [shape: f32[128,256], index: 3, kind: input, shape index: {}]
  %s4 = inlined_call_operand.vmem [shape: f32[1,256], index: 4, kind: input, shape index: {}]
  %s5 = inlined_call_operand.hbm [shape: f32[256,128], index: 5, kind: input, shape index: {}]
  %s6 = inlined_call_operand.hbm [shape: f32[1,128], index: 6, kind: input, shape index: {}]
  %s7 = inlined_call_operand.hbm [shape: f32[128,256], index: 7, kind: input, shape index: {}]
  %s8 = inlined_call_operand.vmem [shape: f32[1,256], index: 8, kind: input, shape index: {}]
  %s9 = inlined_call_operand.hbm [shape: f32[256,256], index: 9, kind: input, shape index: {}]
  %s10 = inlined_call_operand.vmem [shape: f32[1,256], index: 10, kind: input, shape index: {}]
  %s11 = inlined_call_operand.hbm [shape: f32[3,256], index: 11, kind: output, shape index: {}]
  %s12 = sld [smem:[#allocation0]]
  $region86: #{tpu_custom_call.1} parent=0
    _
  %s14 = ssub.s32 1, %s12
  %s15 = scalar_select 0, %s14, %s12
  $region1: #{tpu_custom_call.1} parent=0
    #allocation2 [shape = 'u8[2048]{0}', space=vmem, size = 0x800, scoped, tag = 'input window, operand 0, single buffered']
    #allocation3 [shape = 's32[1]{0}', space=sflag, size = 0x4, scoped, tag = 'scoped memory for tpu_custom_call.1']
    #allocation4 [shape = 's32[1]{0}', space=sflag, size = 0x4, scoped, tag = 'scoped memory for tpu_custom_call.1']
    #allocation5 [shape = 'u8[2048]{0}', space=vmem, size = 0x800, scoped, tag = 'input window, operand 1, single buffered']
    #allocation6 [shape = 's32[1]{0}', space=sflag, size = 0x4, scoped, tag = 'scoped memory for tpu_custom_call.1']
    #allocation7 [shape = 'u8[131072]{0}', space=vmem, size = 0x20000, scoped, tag = 'input window, operand 2, single buffered']
    #allocation8 [shape = 'u8[131072]{0}', space=vmem, size = 0x20000, scoped, tag = 'input window, operand 3, single buffered']
    #allocation9 [shape = 's32[1]{0}', space=sflag, size = 0x4, scoped, tag = 'scoped memory for tpu_custom_call.1']
    #allocation10 [shape = 'u8[131072]{0}', space=vmem, size = 0x20000, scoped, tag = 'input window, operand 5, single buffered']
    #allocation11 [shape = 'u8[512]{0}', space=vmem, size = 0x400, scoped, tag = 'input window, operand 6, single buffered']
    #allocation12 [shape = 's32[1]{0}', space=sflag, size = 0x4, scoped, tag = 'scoped memory for tpu_custom_call.1']
    #allocation13 [shape = 'u8[131072]{0}', space=vmem, size = 0x20000, scoped, tag = 'input window, operand 7, single buffered']
    #allocation14 [shape = 'u8[262144]{0}', space=vmem, size = 0x40000, scoped, tag = 'input window, operand 9, single buffered']
    #allocation15 [shape = 's32[1]{0}', space=sflag, size = 0x4, scoped, tag = 'scoped memory for tpu_custom_call.1']
    #allocation16 [shape = 'u8[4096]{0}', space=vmem, size = 0x1000, scoped, tag = 'output window, operand 0, single buffered']
    %16 = vsyncpa [#allocation3], 0
    %17 = vsyncpa [#allocation6], 0
    %18 = vsyncpa [#allocation9], 0
    %19 = vsyncpa [#allocation12], 0
    %20 = vsyncpa [#allocation15], 0
    %21 = vsyncpa [#allocation4], 0
    // Predicated region
    $region2: #{tpu_custom_call.1} parent=1 // pred_check
      _
    $region3: #{tpu_custom_call.1} parent=1 // pred_check_branch
      %23 = sbr.rel (0) target = $region5
    $region4: #{tpu_custom_call.1} parent=1 // pred_region
      %25 = vsyncadd [#allocation3], 0
      %s27 = sshll.u32 %s0, 4
      %s28 = int_to_ptr.hbm [resolvable:$true] %s27
      %s29 = sshll.u32 [#allocation2], 4
      %s30 = int_to_ptr.vmem [resolvable:$true] %s29
      %32 = dma.hbm_to_vmem [thread:$0]  %s28, 64, %s30, [#allocation3]
    $region5: #{tpu_custom_call.1} parent=1 // pred_fallthru
      _
    // Predicated region
    $region6: #{tpu_custom_call.1} parent=1 // pred_check
      _
    $region7: #{tpu_custom_call.1} parent=1 // pred_check_branch
      %34 = sbr.rel (0) target = $region9
    $region8: #{tpu_custom_call.1} parent=1 // pred_region
      %36 = vsyncadd [#allocation6], 0
      %s38 = sshll.u32 %s1, 4
      %s39 = int_to_ptr.hbm [resolvable:$true] %s38
      %s40 = sshll.u32 [#allocation5], 4
      %s41 = int_to_ptr.vmem [resolvable:$true] %s40
      %43 = dma.hbm_to_vmem [thread:$0]  %s39, 64, %s41, [#allocation6]
    $region9: #{tpu_custom_call.1} parent=1 // pred_fallthru
      _
    // Predicated region
    $region10: #{tpu_custom_call.1} parent=1 // pred_check
      _
    $region11: #{tpu_custom_call.1} parent=1 // pred_check_branch
      %45 = sbr.rel (0) target = $region13
    $region12: #{tpu_custom_call.1} parent=1 // pred_region
      %47 = vsyncadd [#allocation6], 0
      %s48 = sshll.u32 %s2, 4
      %s49 = int_to_ptr.hbm [resolvable:$true] %s48
      %s50 = sshll.u32 [#allocation7], 4
      %s51 = int_to_ptr.vmem [resolvable:$true] %s50
      %56 = dma.hbm_to_vmem [thread:$0]  %s49, 4096, %s51, [#allocation6], 256, 256, 16
    $region13: #{tpu_custom_call.1} parent=1 // pred_fallthru
      _
    // Predicated region
    $region14: #{tpu_custom_call.1} parent=1 // pred_check
      _
    $region15: #{tpu_custom_call.1} parent=1 // pred_check_branch
      %58 = sbr.rel (0) target = $region17
    $region16: #{tpu_custom_call.1} parent=1 // pred_region
      %60 = vsyncadd [#allocation9], 0
      %s61 = sshll.u32 %s3, 4
      %s62 = int_to_ptr.hbm [resolvable:$true] %s61
      %s63 = sshll.u32 [#allocation8], 4
      %s64 = int_to_ptr.vmem [resolvable:$true] %s63
      %69 = dma.hbm_to_vmem [thread:$0]  %s62, 4096, %s64, [#allocation9], 256, 256, 16
    $region17: #{tpu_custom_call.1} parent=1 // pred_fallthru
      _
    // Predicated region
    $region18: #{tpu_custom_call.1} parent=1 // pred_check
      _
    $region19: #{tpu_custom_call.1} parent=1 // pred_check_branch
      %71 = sbr.rel (0) target = $region21
    $region20: #{tpu_custom_call.1} parent=1 // pred_region
      _
    $region21: #{tpu_custom_call.1} parent=1 // pred_fallthru
      _
    // Predicated region
    $region22: #{tpu_custom_call.1} parent=1 // pred_check
      _
    $region23: #{tpu_custom_call.1} parent=1 // pred_check_branch
      %73 = sbr.rel (0) target = $region25
    $region24: #{tpu_custom_call.1} parent=1 // pred_region
      %75 = vsyncadd [#allocation9], 0
      %s76 = sshll.u32 %s5, 4
      %s77 = int_to_ptr.hbm [resolvable:$true] %s76
      %s78 = sshll.u32 [#allocation10], 4
      %s79 = int_to_ptr.vmem [resolvable:$true] %s78
      %84 = dma.hbm_to_vmem [thread:$0]  %s77, 4096, %s79, [#allocation9], 128, 128, 8
    $region25: #{tpu_custom_call.1} parent=1 // pred_fallthru
      _
    // Predicated region
    $region26: #{tpu_custom_call.1} parent=1 // pred_check
      _
    $region27: #{tpu_custom_call.1} parent=1 // pred_check_branch
      %86 = sbr.rel (0) target = $region29
    $region28: #{tpu_custom_call.1} parent=1 // pred_region
      %88 = vsyncadd [#allocation12], 0
      %s90 = sshll.u32 %s6, 4
      %s91 = int_to_ptr.hbm [resolvable:$true] %s90
      %s92 = sshll.u32 [#allocation11], 4
      %s93 = int_to_ptr.vmem [resolvable:$true] %s92
      %95 = dma.hbm_to_vmem [thread:$0]  %s91, 16, %s93, [#allocation12]
    $region29: #{tpu_custom_call.1} parent=1 // pred_fallthru
      _
    // Predicated region
    $region30: #{tpu_custom_call.1} parent=1 // pred_check
      _
    $region31: #{tpu_custom_call.1} parent=1 // pred_check_branch
      %97 = sbr.rel (0) target = $region33
    $region32: #{tpu_custom_call.1} parent=1 // pred_region
      %99 = vsyncadd [#allocation12], 0
      %s100 = sshll.u32 %s7, 4
      %s101 = int_to_ptr.hbm [resolvable:$true] %s100
      %s102 = sshll.u32 [#allocation13], 4
      %s103 = int_to_ptr.vmem [resolvable:$true] %s102
      %108 = dma.hbm_to_vmem [thread:$0]  %s101, 4096, %s103, [#allocation12], 256, 256, 16
    $region33: #{tpu_custom_call.1} parent=1 // pred_fallthru
      _
    // Predicated region
    $region34: #{tpu_custom_call.1} parent=1 // pred_check
      _
    $region35: #{tpu_custom_call.1} parent=1 // pred_check_branch
      %110 = sbr.rel (0) target = $region37
    $region36: #{tpu_custom_call.1} parent=1 // pred_region
      _
    $region37: #{tpu_custom_call.1} parent=1 // pred_fallthru
      _
    // Predicated region
    $region38: #{tpu_custom_call.1} parent=1 // pred_check
      _
    $region39: #{tpu_custom_call.1} parent=1 // pred_check_branch
      %112 = sbr.rel (0) target = $region41
    $region40: #{tpu_custom_call.1} parent=1 // pred_region
      %114 = vsyncadd [#allocation15], 0
      %s115 = sshll.u32 %s9, 4
      %s116 = int_to_ptr.hbm [resolvable:$true] %s115
      %s117 = sshll.u32 [#allocation14], 4
      %s118 = int_to_ptr.vmem [resolvable:$true] %s117
      %123 = dma.hbm_to_vmem [thread:$0]  %s116, 8192, %s118, [#allocation15], 256, 256, 16
    $region41: #{tpu_custom_call.1} parent=1 // pred_fallthru
      _
    // Predicated region
    $region42: #{tpu_custom_call.1} parent=1 // pred_check
      _
    $region43: #{tpu_custom_call.1} parent=1 // pred_check_branch
      %125 = sbr.rel (0) target = $region45
    $region44: #{tpu_custom_call.1} parent=1 // pred_region
      _
    $region45: #{tpu_custom_call.1} parent=1 // pred_fallthru
      _
    // Predicated region
    $region46: #{tpu_custom_call.1} parent=1 // pred_check
      _
    $region47: #{tpu_custom_call.1} parent=1 // pred_check_branch
      %127 = sbr.rel (0) target = $region49
    $region48: #{tpu_custom_call.1} parent=1 // pred_region
      %129 = dma.done [#allocation3], 64
    $region49: #{tpu_custom_call.1} parent=1 // pred_fallthru
      _
    // Predicated region
    $region50: #{tpu_custom_call.1} parent=1 // pred_check
      _
    $region51: #{tpu_custom_call.1} parent=1 // pred_check_branch
      %131 = sbr.rel (0) target = $region53
    $region52: #{tpu_custom_call.1} parent=1 // pred_region
      %133 = dma.done [#allocation6], 64
    $region53: #{tpu_custom_call.1} parent=1 // pred_fallthru
      _
    // Predicated region
    $region54: #{tpu_custom_call.1} parent=1 // pred_check
      _
    $region55: #{tpu_custom_call.1} parent=1 // pred_check_branch
      %135 = sbr.rel (0) target = $region57
    $region56: #{tpu_custom_call.1} parent=1 // pred_region
      %137 = dma.done [#allocation6], 4096
    $region57: #{tpu_custom_call.1} parent=1 // pred_fallthru
      _
    // Predicated region
    $region58: #{tpu_custom_call.1} parent=1 // pred_check
      _
    $region59: #{tpu_custom_call.1} parent=1 // pred_check_branch
      %139 = sbr.rel (0) target = $region61
    $region60: #{tpu_custom_call.1} parent=1 // pred_region
      %141 = dma.done [#allocation9], 4096
    $region61: #{tpu_custom_call.1} parent=1 // pred_fallthru
      _
    // Predicated region
    $region62: #{tpu_custom_call.1} parent=1 // pred_check
      _
    $region63: #{tpu_custom_call.1} parent=1 // pred_check_branch
      %143 = sbr.rel (0) target = $region65
    $region64: #{tpu_custom_call.1} parent=1 // pred_region
      %145 = dma.done [#allocation9], 4096
    $region65: #{tpu_custom_call.1} parent=1 // pred_fallthru
      _
    // Predicated region
    $region66: #{tpu_custom_call.1} parent=1 // pred_check
      _
    $region67: #{tpu_custom_call.1} parent=1 // pred_check_branch
      %147 = sbr.rel (0) target = $region69
    $region68: #{tpu_custom_call.1} parent=1 // pred_region
      %149 = dma.done [#allocation12], 16
    $region69: #{tpu_custom_call.1} parent=1 // pred_fallthru
      _
    // Predicated region
    $region70: #{tpu_custom_call.1} parent=1 // pred_check
      _
    $region71: #{tpu_custom_call.1} parent=1 // pred_check_branch
      %151 = sbr.rel (0) target = $region73
    $region72: #{tpu_custom_call.1} parent=1 // pred_region
      %153 = dma.done [#allocation12], 4096
    $region73: #{tpu_custom_call.1} parent=1 // pred_fallthru
      _
    // Predicated region
    $region74: #{tpu_custom_call.1} parent=1 // pred_check
      _
    $region75: #{tpu_custom_call.1} parent=1 // pred_check_branch
      %155 = sbr.rel (0) target = $region77
    $region76: #{tpu_custom_call.1} parent=1 // pred_region
      %157 = dma.done [#allocation15], 8192
    $region77: #{tpu_custom_call.1} parent=1 // pred_fallthru
      _
    %v158 = vld [vmem:[#allocation2] sm:$0x7]
    %v159 = vld [vmem:[#allocation7] sm:$0xff]
    %v160 = vld [vmem:[#allocation7 + $0x8] sm:$0xff]
    %v161 = vld [vmem:[#allocation7 + $0x10] sm:$0xff]
    %v162 = vld [vmem:[#allocation7 + $0x18] sm:$0xff]
    %v163 = vld [vmem:[#allocation7 + $0x20] sm:$0xff]
    %v164 = vld [vmem:[#allocation7 + $0x28] sm:$0xff]
    %v165 = vld [vmem:[#allocation7 + $0x30] sm:$0xff]
    %v166 = vld [vmem:[#allocation7 + $0x38] sm:$0xff]
    %v167 = vld [vmem:[#allocation7 + $0x40] sm:$0xff]
    %v168 = vld [vmem:[#allocation7 + $0x48] sm:$0xff]
    %v169 = vld [vmem:[#allocation7 + $0x50] sm:$0xff]
    %v170 = vld [vmem:[#allocation7 + $0x58] sm:$0xff]
    %v171 = vld [vmem:[#allocation7 + $0x60] sm:$0xff]
    %v172 = vld [vmem:[#allocation7 + $0x68] sm:$0xff]
    %v173 = vld [vmem:[#allocation7 + $0x70] sm:$0xff]
    %v174 = vld [vmem:[#allocation7 + $0x78] sm:$0xff]
    %v175 = vld [vmem:[#allocation7 + $0x80] sm:$0xff]
    %v176 = vld [vmem:[#allocation7 + $0x88] sm:$0xff]
    %v177 = vld [vmem:[#allocation7 + $0x90] sm:$0xff]
    %v178 = vld [vmem:[#allocation7 + $0x98] sm:$0xff]
    %v179 = vld [vmem:[#allocation7 + $0xa0] sm:$0xff]
    %v180 = vld [vmem:[#allocation7 + $0xa8] sm:$0xff]
    %v181 = vld [vmem:[#allocation7 + $0xb0] sm:$0xff]
    %v182 = vld [vmem:[#allocation7 + $0xb8] sm:$0xff]
    %v183 = vld [vmem:[#allocation7 + $0xc0] sm:$0xff]
    %v184 = vld [vmem:[#allocation7 + $0xc8] sm:$0xff]
    %v185 = vld [vmem:[#allocation7 + $0xd0] sm:$0xff]
    %v186 = vld [vmem:[#allocation7 + $0xd8] sm:$0xff]
    %v187 = vld [vmem:[#allocation7 + $0xe0] sm:$0xff]
    %v188 = vld [vmem:[#allocation7 + $0xe8] sm:$0xff]
    %v189 = vld [vmem:[#allocation7 + $0xf0] sm:$0xff]
    %v190 = vld [vmem:[#allocation7 + $0xf8] sm:$0xff]
    %v191 = vld [vmem:[#allocation5] sm:$0x7]
    %v192 = vld [vmem:[#allocation8] sm:$0xff]
    %v193 = vld [vmem:[#allocation8 + $0x8] sm:$0xff]
    %v194 = vld [vmem:[#allocation8 + $0x10] sm:$0xff]
    %v195 = vld [vmem:[#allocation8 + $0x18] sm:$0xff]
    %v196 = vld [vmem:[#allocation8 + $0x20] sm:$0xff]
    %v197 = vld [vmem:[#allocation8 + $0x28] sm:$0xff]
    %v198 = vld [vmem:[#allocation8 + $0x30] sm:$0xff]
    %v199 = vld [vmem:[#allocation8 + $0x38] sm:$0xff]
    %v200 = vld [vmem:[#allocation8 + $0x40] sm:$0xff]
    %v201 = vld [vmem:[#allocation8 + $0x48] sm:$0xff]
    %v202 = vld [vmem:[#allocation8 + $0x50] sm:$0xff]
    %v203 = vld [vmem:[#allocation8 + $0x58] sm:$0xff]
    %v204 = vld [vmem:[#allocation8 + $0x60] sm:$0xff]
    %v205 = vld [vmem:[#allocation8 + $0x68] sm:$0xff]
    %v206 = vld [vmem:[#allocation8 + $0x70] sm:$0xff]
    %v207 = vld [vmem:[#allocation8 + $0x78] sm:$0xff]
    %v208 = vld [vmem:[#allocation8 + $0x80] sm:$0xff]
    %v209 = vld [vmem:[#allocation8 + $0x88] sm:$0xff]
    %v210 = vld [vmem:[#allocation8 + $0x90] sm:$0xff]
    %v211 = vld [vmem:[#allocation8 + $0x98] sm:$0xff]
    %v212 = vld [vmem:[#allocation8 + $0xa0] sm:$0xff]
    %v213 = vld [vmem:[#allocation8 + $0xa8] sm:$0xff]
    %v214 = vld [vmem:[#allocation8 + $0xb0] sm:$0xff]
    %v215 = vld [vmem:[#allocation8 + $0xb8] sm:$0xff]
    %v216 = vld [vmem:[#allocation8 + $0xc0] sm:$0xff]
    %v217 = vld [vmem:[#allocation8 + $0xc8] sm:$0xff]
    %v218 = vld [vmem:[#allocation8 + $0xd0] sm:$0xff]
    %v219 = vld [vmem:[#allocation8 + $0xd8] sm:$0xff]
    %v220 = vld [vmem:[#allocation8 + $0xe0] sm:$0xff]
    %v221 = vld [vmem:[#allocation8 + $0xe8] sm:$0xff]
    %v222 = vld [vmem:[#allocation8 + $0xf0] sm:$0xff]
    %v223 = vld [vmem:[#allocation8 + $0xf8] sm:$0xff]
    %224 = vmatpush.msra.mxu0 %v222
    %225 = vmatpush.msra.mxu0 %v220
    %226 = vmatpush.msra.mxu0 %v218
    %227 = vmatpush.msra.mxu0 %v216
    %228 = vmatpush.msra.mxu0 %v214
    %229 = vmatpush.msra.mxu0 %v212
    %230 = vmatpush.msra.mxu0 %v210
    %231 = vmatpush.msra.mxu0 %v208
    %232 = vmatpush.msra.mxu0 %v206
    %233 = vmatpush.msra.mxu0 %v204
    %234 = vmatpush.msra.mxu0 %v202
    %235 = vmatpush.msra.mxu0 %v200
    %236 = vmatpush.msra.mxu0 %v198
    %237 = vmatpush.msra.mxu0 %v196
    %238 = vmatpush.msra.mxu0 %v194
    %239 = vmatpush.msra.mxu0 %v192
    %240 = vmatmul.f32.gmra.mxu0 %v191
    %v241 = vpop.f32.mrf.mxu0
    %v242 = vadd.f32 0.0, %v241
    %243 = vdwg.mxu0
    %244 = vmatpush.msra.mxu0 %v223
    %245 = vmatpush.msra.mxu0 %v221
    %246 = vmatpush.msra.mxu0 %v219
    %247 = vmatpush.msra.mxu0 %v217
    %248 = vmatpush.msra.mxu0 %v215
    %249 = vmatpush.msra.mxu0 %v213
    %250 = vmatpush.msra.mxu0 %v211
    %251 = vmatpush.msra.mxu0 %v209
    %252 = vmatpush.msra.mxu0 %v207
    %253 = vmatpush.msra.mxu0 %v205
    %254 = vmatpush.msra.mxu0 %v203
    %255 = vmatpush.msra.mxu0 %v201
    %256 = vmatpush.msra.mxu0 %v199
    %257 = vmatpush.msra.mxu0 %v197
    %258 = vmatpush.msra.mxu0 %v195
    %259 = vmatpush.msra.mxu0 %v193
    %260 = vmatmul.f32.gmra.mxu0 %v191
    %v261 = vpop.f32.mrf.mxu0
    %v262 = vadd.f32 0.0, %v261
    %263 = vdwg.mxu0
    %264 = vmatpush.msra.mxu0 %v189
    %265 = vmatpush.msra.mxu0 %v187
    %266 = vmatpush.msra.mxu0 %v185
    %267 = vmatpush.msra.mxu0 %v183
    %268 = vmatpush.msra.mxu0 %v181
    %269 = vmatpush.msra.mxu0 %v179
    %270 = vmatpush.msra.mxu0 %v177
    %271 = vmatpush.msra.mxu0 %v175
    %272 = vmatpush.msra.mxu0 %v173
    %273 = vmatpush.msra.mxu0 %v171
    %274 = vmatpush.msra.mxu0 %v169
    %275 = vmatpush.msra.mxu0 %v167
    %276 = vmatpush.msra.mxu0 %v165
    %277 = vmatpush.msra.mxu0 %v163
    %278 = vmatpush.msra.mxu0 %v161
    %279 = vmatpush.msra.mxu0 %v159
    %280 = vmatmul.f32.gmra.mxu0 %v158
    %v281 = vpop.f32.mrf.mxu0
    %v282 = vadd.f32 %v242, %v281
    %283 = vdwg.mxu0
    %284 = vmatpush.msra.mxu0 %v190
    %285 = vmatpush.msra.mxu0 %v188
    %286 = vmatpush.msra.mxu0 %v186
    %287 = vmatpush.msra.mxu0 %v184
    %288 = vmatpush.msra.mxu0 %v182
    %289 = vmatpush.msra.mxu0 %v180
    %290 = vmatpush.msra.mxu0 %v178
    %291 = vmatpush.msra.mxu0 %v176
    %292 = vmatpush.msra.mxu0 %v174
    %293 = vmatpush.msra.mxu0 %v172
    %294 = vmatpush.msra.mxu0 %v170
    %295 = vmatpush.msra.mxu0 %v168
    %296 = vmatpush.msra.mxu0 %v166
    %297 = vmatpush.msra.mxu0 %v164
    %298 = vmatpush.msra.mxu0 %v162
    %299 = vmatpush.msra.mxu0 %v160
    %300 = vmatmul.f32.gmra.mxu0 %v158
    %v301 = vpop.f32.mrf.mxu0
    %v302 = vadd.f32 %v262, %v301
    %303 = vdwg.mxu0
    %v304 = vld [vmem:[%s4] sm:$0x3]
    %v306 = vperm.slane %v304, 0
    %v307 = vperm.slane %v304, 1
    %v310 = vadd.f32 %v282, %v306
    %v311 = vadd.f32 %v302, %v307
    %vm312 = vcmp.gt.f32.partialorder %v310, 0.0
    %vm313 = vcmp.gt.f32.partialorder %v311, 0.0
    %v314 = vmul.f32 %v310, 0.1
    %v315 = vmul.f32 %v311, 0.1
    %v316 = vsel %vm312, %v310, %v314
    %v317 = vsel %vm313, %v311, %v315
    %v318 = vld [vmem:[#allocation10] sm:$0xff]
    %v319 = vld [vmem:[#allocation10 + $0x8] sm:$0xff]
    %v320 = vld [vmem:[#allocation10 + $0x10] sm:$0xff]
    %v321 = vld [vmem:[#allocation10 + $0x18] sm:$0xff]
    %v322 = vld [vmem:[#allocation10 + $0x20] sm:$0xff]
    %v323 = vld [vmem:[#allocation10 + $0x28] sm:$0xff]
    %v324 = vld [vmem:[#allocation10 + $0x30] sm:$0xff]
    %v325 = vld [vmem:[#allocation10 + $0x38] sm:$0xff]
    %v326 = vld [vmem:[#allocation10 + $0x40] sm:$0xff]
    %v327 = vld [vmem:[#allocation10 + $0x48] sm:$0xff]
    %v328 = vld [vmem:[#allocation10 + $0x50] sm:$0xff]
    %v329 = vld [vmem:[#allocation10 + $0x58] sm:$0xff]
    %v330 = vld [vmem:[#allocation10 + $0x60] sm:$0xff]
    %v331 = vld [vmem:[#allocation10 + $0x68] sm:$0xff]
    %v332 = vld [vmem:[#allocation10 + $0x70] sm:$0xff]
    %v333 = vld [vmem:[#allocation10 + $0x78] sm:$0xff]
    %v334 = vld [vmem:[#allocation10 + $0x80] sm:$0xff]
    %v335 = vld [vmem:[#allocation10 + $0x88] sm:$0xff]
    %v336 = vld [vmem:[#allocation10 + $0x90] sm:$0xff]
    %v337 = vld [vmem:[#allocation10 + $0x98] sm:$0xff]
    %v338 = vld [vmem:[#allocation10 + $0xa0] sm:$0xff]
    %v339 = vld [vmem:[#allocation10 + $0xa8] sm:$0xff]
    %v340 = vld [vmem:[#allocation10 + $0xb0] sm:$0xff]
    %v341 = vld [vmem:[#allocation10 + $0xb8] sm:$0xff]
    %v342 = vld [vmem:[#allocation10 + $0xc0] sm:$0xff]
    %v343 = vld [vmem:[#allocation10 + $0xc8] sm:$0xff]
    %v344 = vld [vmem:[#allocation10 + $0xd0] sm:$0xff]
    %v345 = vld [vmem:[#allocation10 + $0xd8] sm:$0xff]
    %v346 = vld [vmem:[#allocation10 + $0xe0] sm:$0xff]
    %v347 = vld [vmem:[#allocation10 + $0xe8] sm:$0xff]
    %v348 = vld [vmem:[#allocation10 + $0xf0] sm:$0xff]
    %v349 = vld [vmem:[#allocation10 + $0xf8] sm:$0xff]
    %v350 = vld [vmem:[#allocation11] sm:$0x1]
    %v352 = vperm.slane %v350, 0
    %354 = vmatpush.msra.mxu0 %v333
    %355 = vmatpush.msra.mxu0 %v332
    %356 = vmatpush.msra.mxu0 %v331
    %357 = vmatpush.msra.mxu0 %v330
    %358 = vmatpush.msra.mxu0 %v329
    %359 = vmatpush.msra.mxu0 %v328
    %360 = vmatpush.msra.mxu0 %v327
    %361 = vmatpush.msra.mxu0 %v326
    %362 = vmatpush.msra.mxu0 %v325
    %363 = vmatpush.msra.mxu0 %v324
    %364 = vmatpush.msra.mxu0 %v323
    %365 = vmatpush.msra.mxu0 %v322
    %366 = vmatpush.msra.mxu0 %v321
    %367 = vmatpush.msra.mxu0 %v320
    %368 = vmatpush.msra.mxu0 %v319
    %369 = vmatpush.msra.mxu0 %v318
    %370 = vmatmul.f32.gmra.mxu0 %v316
    %v371 = vpop.f32.mrf.mxu0
    %v372 = vadd.f32 %v352, %v371
    %373 = vdwg.mxu0
    %374 = vmatpush.msra.mxu0 %v349
    %375 = vmatpush.msra.mxu0 %v348
    %376 = vmatpush.msra.mxu0 %v347
    %377 = vmatpush.msra.mxu0 %v346
    %378 = vmatpush.msra.mxu0 %v345
    %379 = vmatpush.msra.mxu0 %v344
    %380 = vmatpush.msra.mxu0 %v343
    %381 = vmatpush.msra.mxu0 %v342
    %382 = vmatpush.msra.mxu0 %v341
    %383 = vmatpush.msra.mxu0 %v340
    %384 = vmatpush.msra.mxu0 %v339
    %385 = vmatpush.msra.mxu0 %v338
    %386 = vmatpush.msra.mxu0 %v337
    %387 = vmatpush.msra.mxu0 %v336
    %388 = vmatpush.msra.mxu0 %v335
    %389 = vmatpush.msra.mxu0 %v334
    %390 = vmatmul.f32.gmra.mxu0 %v317
    %v391 = vpop.f32.mrf.mxu0
    %v392 = vadd.f32 %v372, %v391
    %393 = vdwg.mxu0
    %vm394 = vcmp.gt.f32.partialorder %v392, 0.0
    %v395 = vmul.f32 %v392, 0.1
    %v396 = vsel %vm394, %v392, %v395
    %v397 = vld [vmem:[#allocation13] sm:$0xff]
    %v398 = vld [vmem:[#allocation13 + $0x8] sm:$0xff]
    %v399 = vld [vmem:[#allocation13 + $0x10] sm:$0xff]
    %v400 = vld [vmem:[#allocation13 + $0x18] sm:$0xff]
    %v401 = vld [vmem:[#allocation13 + $0x20] sm:$0xff]
    %v402 = vld [vmem:[#allocation13 + $0x28] sm:$0xff]
    %v403 = vld [vmem:[#allocation13 + $0x30] sm:$0xff]
    %v404 = vld [vmem:[#allocation13 + $0x38] sm:$0xff]
    %v405 = vld [vmem:[#allocation13 + $0x40] sm:$0xff]
    %v406 = vld [vmem:[#allocation13 + $0x48] sm:$0xff]
    %v407 = vld [vmem:[#allocation13 + $0x50] sm:$0xff]
    %v408 = vld [vmem:[#allocation13 + $0x58] sm:$0xff]
    %v409 = vld [vmem:[#allocation13 + $0x60] sm:$0xff]
    %v410 = vld [vmem:[#allocation13 + $0x68] sm:$0xff]
    %v411 = vld [vmem:[#allocation13 + $0x70] sm:$0xff]
    %v412 = vld [vmem:[#allocation13 + $0x78] sm:$0xff]
    %v413 = vld [vmem:[#allocation13 + $0x80] sm:$0xff]
    %v414 = vld [vmem:[#allocation13 + $0x88] sm:$0xff]
    %v415 = vld [vmem:[#allocation13 + $0x90] sm:$0xff]
    %v416 = vld [vmem:[#allocation13 + $0x98] sm:$0xff]
    %v417 = vld [vmem:[#allocation13 + $0xa0] sm:$0xff]
    %v418 = vld [vmem:[#allocation13 + $0xa8] sm:$0xff]
    %v419 = vld [vmem:[#allocation13 + $0xb0] sm:$0xff]
    %v420 = vld [vmem:[#allocation13 + $0xb8] sm:$0xff]
    %v421 = vld [vmem:[#allocation13 + $0xc0] sm:$0xff]
    %v422 = vld [vmem:[#allocation13 + $0xc8] sm:$0xff]
    %v423 = vld [vmem:[#allocation13 + $0xd0] sm:$0xff]
    %v424 = vld [vmem:[#allocation13 + $0xd8] sm:$0xff]
    %v425 = vld [vmem:[#allocation13 + $0xe0] sm:$0xff]
    %v426 = vld [vmem:[#allocation13 + $0xe8] sm:$0xff]
    %v427 = vld [vmem:[#allocation13 + $0xf0] sm:$0xff]
    %v428 = vld [vmem:[#allocation13 + $0xf8] sm:$0xff]
    %v429 = vld [vmem:[%s8] sm:$0x3]
    %v431 = vperm.slane %v429, 0
    %v432 = vperm.slane %v429, 1
    %435 = vmatpush.msra.mxu0 %v427
    %436 = vmatpush.msra.mxu0 %v425
    %437 = vmatpush.msra.mxu0 %v423
    %438 = vmatpush.msra.mxu0 %v421
    %439 = vmatpush.msra.mxu0 %v419
    %440 = vmatpush.msra.mxu0 %v417
    %441 = vmatpush.msra.mxu0 %v415
    %442 = vmatpush.msra.mxu0 %v413
    %443 = vmatpush.msra.mxu0 %v411
    %444 = vmatpush.msra.mxu0 %v409
    %445 = vmatpush.msra.mxu0 %v407
    %446 = vmatpush.msra.mxu0 %v405
    %447 = vmatpush.msra.mxu0 %v403
    %448 = vmatpush.msra.mxu0 %v401
    %449 = vmatpush.msra.mxu0 %v399
    %450 = vmatpush.msra.mxu0 %v397
    %451 = vmatmul.f32.gmra.mxu0 %v396
    %v452 = vpop.f32.mrf.mxu0
    %v453 = vadd.f32 %v431, %v452
    %454 = vdwg.mxu0
    %455 = vmatpush.msra.mxu0 %v428
    %456 = vmatpush.msra.mxu0 %v426
    %457 = vmatpush.msra.mxu0 %v424
    %458 = vmatpush.msra.mxu0 %v422
    %459 = vmatpush.msra.mxu0 %v420
    %460 = vmatpush.msra.mxu0 %v418
    %461 = vmatpush.msra.mxu0 %v416
    %462 = vmatpush.msra.mxu0 %v414
    %463 = vmatpush.msra.mxu0 %v412
    %464 = vmatpush.msra.mxu0 %v410
    %465 = vmatpush.msra.mxu0 %v408
    %466 = vmatpush.msra.mxu0 %v406
    %467 = vmatpush.msra.mxu0 %v404
    %468 = vmatpush.msra.mxu0 %v402
    %469 = vmatpush.msra.mxu0 %v400
    %470 = vmatpush.msra.mxu0 %v398
    %471 = vmatmul.f32.gmra.mxu0 %v396
    %v472 = vpop.f32.mrf.mxu0
    %v473 = vadd.f32 %v432, %v472
    %474 = vdwg.mxu0
    %vm475 = vcmp.gt.f32.partialorder %v453, 0.0
    %vm476 = vcmp.gt.f32.partialorder %v473, 0.0
    %v477 = vmul.f32 %v453, 0.1
    %v478 = vmul.f32 %v473, 0.1
    %v479 = vsel %vm475, %v453, %v477
    %v480 = vsel %vm476, %v473, %v478
    %v481 = vld [vmem:[#allocation14] sm:$0xff]
    %v482 = vld [vmem:[#allocation14 + $0x8] sm:$0xff]
    %v483 = vld [vmem:[#allocation14 + $0x10] sm:$0xff]
    %v484 = vld [vmem:[#allocation14 + $0x18] sm:$0xff]
    %v485 = vld [vmem:[#allocation14 + $0x20] sm:$0xff]
    %v486 = vld [vmem:[#allocation14 + $0x28] sm:$0xff]
    %v487 = vld [vmem:[#allocation14 + $0x30] sm:$0xff]
    %v488 = vld [vmem:[#allocation14 + $0x38] sm:$0xff]
    %v489 = vld [vmem:[#allocation14 + $0x40] sm:$0xff]
    %v490 = vld [vmem:[#allocation14 + $0x48] sm:$0xff]
    %v491 = vld [vmem:[#allocation14 + $0x50] sm:$0xff]
    %v492 = vld [vmem:[#allocation14 + $0x58] sm:$0xff]
    %v493 = vld [vmem:[#allocation14 + $0x60] sm:$0xff]
    %v494 = vld [vmem:[#allocation14 + $0x68] sm:$0xff]
    %v495 = vld [vmem:[#allocation14 + $0x70] sm:$0xff]
    %v496 = vld [vmem:[#allocation14 + $0x78] sm:$0xff]
    %v497 = vld [vmem:[#allocation14 + $0x80] sm:$0xff]
    %v498 = vld [vmem:[#allocation14 + $0x88] sm:$0xff]
    %v499 = vld [vmem:[#allocation14 + $0x90] sm:$0xff]
    %v500 = vld [vmem:[#allocation14 + $0x98] sm:$0xff]
    %v501 = vld [vmem:[#allocation14 + $0xa0] sm:$0xff]
    %v502 = vld [vmem:[#allocation14 + $0xa8] sm:$0xff]
    %v503 = vld [vmem:[#allocation14 + $0xb0] sm:$0xff]
    %v504 = vld [vmem:[#allocation14 + $0xb8] sm:$0xff]
    %v505 = vld [vmem:[#allocation14 + $0xc0] sm:$0xff]
    %v506 = vld [vmem:[#allocation14 + $0xc8] sm:$0xff]
    %v507 = vld [vmem:[#allocation14 + $0xd0] sm:$0xff]
    %v508 = vld [vmem:[#allocation14 + $0xd8] sm:$0xff]
    %v509 = vld [vmem:[#allocation14 + $0xe0] sm:$0xff]
    %v510 = vld [vmem:[#allocation14 + $0xe8] sm:$0xff]
    %v511 = vld [vmem:[#allocation14 + $0xf0] sm:$0xff]
    %v512 = vld [vmem:[#allocation14 + $0xf8] sm:$0xff]
    %v513 = vld [vmem:[#allocation14 + $0x100] sm:$0xff]
    %v514 = vld [vmem:[#allocation14 + $0x108] sm:$0xff]
    %v515 = vld [vmem:[#allocation14 + $0x110] sm:$0xff]
    %v516 = vld [vmem:[#allocation14 + $0x118] sm:$0xff]
    %v517 = vld [vmem:[#allocation14 + $0x120] sm:$0xff]
    %v518 = vld [vmem:[#allocation14 + $0x128] sm:$0xff]
    %v519 = vld [vmem:[#allocation14 + $0x130] sm:$0xff]
    %v520 = vld [vmem:[#allocation14 + $0x138] sm:$0xff]
    %v521 = vld [vmem:[#allocation14 + $0x140] sm:$0xff]
    %v522 = vld [vmem:[#allocation14 + $0x148] sm:$0xff]
    %v523 = vld [vmem:[#allocation14 + $0x150] sm:$0xff]
    %v524 = vld [vmem:[#allocation14 + $0x158] sm:$0xff]
    %v525 = vld [vmem:[#allocation14 + $0x160] sm:$0xff]
    %v526 = vld [vmem:[#allocation14 + $0x168] sm:$0xff]
    %v527 = vld [vmem:[#allocation14 + $0x170] sm:$0xff]
    %v528 = vld [vmem:[#allocation14 + $0x178] sm:$0xff]
    %v529 = vld [vmem:[#allocation14 + $0x180] sm:$0xff]
    %v530 = vld [vmem:[#allocation14 + $0x188] sm:$0xff]
    %v531 = vld [vmem:[#allocation14 + $0x190] sm:$0xff]
    %v532 = vld [vmem:[#allocation14 + $0x198] sm:$0xff]
    %v533 = vld [vmem:[#allocation14 + $0x1a0] sm:$0xff]
    %v534 = vld [vmem:[#allocation14 + $0x1a8] sm:$0xff]
    %v535 = vld [vmem:[#allocation14 + $0x1b0] sm:$0xff]
    %v536 = vld [vmem:[#allocation14 + $0x1b8] sm:$0xff]
    %v537 = vld [vmem:[#allocation14 + $0x1c0] sm:$0xff]
    %v538 = vld [vmem:[#allocation14 + $0x1c8] sm:$0xff]
    %v539 = vld [vmem:[#allocation14 + $0x1d0] sm:$0xff]
    %v540 = vld [vmem:[#allocation14 + $0x1d8] sm:$0xff]
    %v541 = vld [vmem:[#allocation14 + $0x1e0] sm:$0xff]
    %v542 = vld [vmem:[#allocation14 + $0x1e8] sm:$0xff]
    %v543 = vld [vmem:[#allocation14 + $0x1f0] sm:$0xff]
    %v544 = vld [vmem:[#allocation14 + $0x1f8] sm:$0xff]
    %v545 = vld [vmem:[%s10] sm:$0x3]
    %v547 = vperm.slane %v545, 0
    %v548 = vperm.slane %v545, 1
    %551 = vmatpush.msra.mxu0 %v511
    %552 = vmatpush.msra.mxu0 %v509
    %553 = vmatpush.msra.mxu0 %v507
    %554 = vmatpush.msra.mxu0 %v505
    %555 = vmatpush.msra.mxu0 %v503
    %556 = vmatpush.msra.mxu0 %v501
    %557 = vmatpush.msra.mxu0 %v499
    %558 = vmatpush.msra.mxu0 %v497
    %559 = vmatpush.msra.mxu0 %v495
    %560 = vmatpush.msra.mxu0 %v493
    %561 = vmatpush.msra.mxu0 %v491
    %562 = vmatpush.msra.mxu0 %v489
    %563 = vmatpush.msra.mxu0 %v487
    %564 = vmatpush.msra.mxu0 %v485
    %565 = vmatpush.msra.mxu0 %v483
    %566 = vmatpush.msra.mxu0 %v481
    %567 = vmatmul.f32.gmra.mxu0 %v479
    %v568 = vpop.f32.mrf.mxu0
    %v569 = vadd.f32 %v547, %v568
    %570 = vdwg.mxu0
    %571 = vmatpush.msra.mxu0 %v543
    %572 = vmatpush.msra.mxu0 %v541
    %573 = vmatpush.msra.mxu0 %v539
    %574 = vmatpush.msra.mxu0 %v537
    %575 = vmatpush.msra.mxu0 %v535
    %576 = vmatpush.msra.mxu0 %v533
    %577 = vmatpush.msra.mxu0 %v531
    %578 = vmatpush.msra.mxu0 %v529
    %579 = vmatpush.msra.mxu0 %v527
    %580 = vmatpush.msra.mxu0 %v525
    %581 = vmatpush.msra.mxu0 %v523
    %582 = vmatpush.msra.mxu0 %v521
    %583 = vmatpush.msra.mxu0 %v519
    %584 = vmatpush.msra.mxu0 %v517
    %585 = vmatpush.msra.mxu0 %v515
    %586 = vmatpush.msra.mxu0 %v513
    %587 = vmatmul.f32.gmra.mxu0 %v480
    %v588 = vpop.f32.mrf.mxu0
    %v589 = vadd.f32 %v569, %v588
    %590 = vdwg.mxu0
    %591 = vmatpush.msra.mxu0 %v512
    %592 = vmatpush.msra.mxu0 %v510
    %593 = vmatpush.msra.mxu0 %v508
    %594 = vmatpush.msra.mxu0 %v506
    %595 = vmatpush.msra.mxu0 %v504
    %596 = vmatpush.msra.mxu0 %v502
    %597 = vmatpush.msra.mxu0 %v500
    %598 = vmatpush.msra.mxu0 %v498
    %599 = vmatpush.msra.mxu0 %v496
    %600 = vmatpush.msra.mxu0 %v494
    %601 = vmatpush.msra.mxu0 %v492
    %602 = vmatpush.msra.mxu0 %v490
    %603 = vmatpush.msra.mxu0 %v488
    %604 = vmatpush.msra.mxu0 %v486
    %605 = vmatpush.msra.mxu0 %v484
    %606 = vmatpush.msra.mxu0 %v482
    %607 = vmatmul.f32.gmra.mxu0 %v479
    %v608 = vpop.f32.mrf.mxu0
    %v609 = vadd.f32 %v548, %v608
    %610 = vdwg.mxu0
    %611 = vmatpush.msra.mxu0 %v544
    %612 = vmatpush.msra.mxu0 %v542
    %613 = vmatpush.msra.mxu0 %v540
    %614 = vmatpush.msra.mxu0 %v538
    %615 = vmatpush.msra.mxu0 %v536
    %616 = vmatpush.msra.mxu0 %v534
    %617 = vmatpush.msra.mxu0 %v532
    %618 = vmatpush.msra.mxu0 %v530
    %619 = vmatpush.msra.mxu0 %v528
    %620 = vmatpush.msra.mxu0 %v526
    %621 = vmatpush.msra.mxu0 %v524
    %622 = vmatpush.msra.mxu0 %v522
    %623 = vmatpush.msra.mxu0 %v520
    %624 = vmatpush.msra.mxu0 %v518
    %625 = vmatpush.msra.mxu0 %v516
    %626 = vmatpush.msra.mxu0 %v514
    %627 = vmatmul.f32.gmra.mxu0 %v480
    %v628 = vpop.f32.mrf.mxu0
    %v629 = vadd.f32 %v609, %v628
    %630 = vdwg.mxu0
    %v633 = vrot.slane %v629, 4
    %vm634 = vcmask 1043456
    %v635 = vsel %vm634, %v589, %v633
    %637 = vst [vmem:[#allocation16] sm:$0x77] %v635
    // Predicated region
    $region78: #{tpu_custom_call.1} parent=1 // pred_check
      _
    $region79: #{tpu_custom_call.1} parent=1 // pred_check_branch
      %639 = sbr.rel (0) target = $region81
    $region80: #{tpu_custom_call.1} parent=1 // pred_region
      %641 = vsyncadd [#allocation4], 0
      %s643 = sshll.u32 [#allocation16], 4
      %s644 = int_to_ptr.vmem [resolvable:$true] %s643
      %s645 = sshll.u32 %s11, 4
      %s646 = int_to_ptr.hbm [resolvable:$true] %s645
      %648 = dma.vmem_to_hbm [thread:$0]  %s644, 128, %s646, [#allocation4]
    $region81: #{tpu_custom_call.1} parent=1 // pred_fallthru
      _
    // Predicated region
    $region82: #{tpu_custom_call.1} parent=1 // pred_check
      _
    $region83: #{tpu_custom_call.1} parent=1 // pred_check_branch
      %650 = sbr.rel (0) target = $region85
    $region84: #{tpu_custom_call.1} parent=1 // pred_region
      %652 = dma.done [#allocation4], 128
    $region85: #{tpu_custom_call.1} parent=1 // pred_fallthru
      _
    %653 = vsyncpa [#allocation3], 1
    %654 = vsyncpa [#allocation6], 1
    %655 = vsyncpa [#allocation9], 1
    %656 = vsyncpa [#allocation12], 1
    %657 = vsyncpa [#allocation15], 1
    %658 = vsyncpa [#allocation4], 1

</llo_original>
